<compile_context>
chip_gen: v6e
topology: v6e:2x2x1
jax: 0.10.0
libtpu: 0.0.40
codegen_flags: <defaults>
</compile_context>

<pallas_src>
import functools

import jax
import jax.numpy as jnp
from jax.experimental import pallas as pl
from jax.experimental.pallas import tpu as pltpu

LANE = 128
ROW_ALIGN = 16                       # block-row granularity (covers f32 & bf16 packing)
ACC_ROWS = 8                         # accumulator sublane rows
TILE_BYTES_BUDGET = 4 * 1024 * 1024  # combined pred+target bytes per grid step


def _dice_kernel(pred_ref, target_ref, out_ref, *, n_valid, blocks_per_split,
                 all_tiles_full):
    i = pl.program_id(1)
    tile_rows, lane = pred_ref.shape
    block = tile_rows * lane

    @pl.when(i == 0)
    def _init():
        out_ref[...] = jnp.zeros_like(out_ref)

    # sigmoid(x) = 0.5 * tanh(x / 2) + 0.5  -> single EUP push per element.
    x = pred_ref[...].astype(jnp.float32)
    p = 0.5 * jnp.tanh(0.5 * x) + 0.5
    t = target_ref[...].astype(jnp.float32)

    def _accum(pv, tv):
        # Row-reduce the tile partials with a VALU add tree (lane axis kept,
        # no XLU work), then += into the tiny (8,128) resident accumulators.
        inter = jnp.sum((pv * tv).reshape(tile_rows // ACC_ROWS, ACC_ROWS, lane),
                        axis=0)
        denom = jnp.sum((pv + tv).reshape(tile_rows // ACC_ROWS, ACC_ROWS, lane),
                        axis=0)
        out_ref[0, 0] += inter
        out_ref[0, 1] += denom

    if all_tiles_full:
        # Hot path: loads + tanh + two vector FMAs + small accumulator update.
        _accum(p, t)
    else:
        # Intended (unclamped) global tile index -> valid elements in this tile.
        g = pl.program_id(0) * blocks_per_split + i
        valid = n_valid - g * block   # may be <= 0 (dead tile) or >= block (full)

        @pl.when(valid >= block)
        def _full_tile():
            _accum(p, t)

        @pl.when(jnp.logical_and(valid > 0, valid < block))
        def _tail_tile():
            row = jax.lax.broadcasted_iota(jnp.int32, (tile_rows, lane), 0)
            col = jax.lax.broadcasted_iota(jnp.int32, (tile_rows, lane), 1)
            m = (row * lane + col) < valid
            # jnp.where, not multiply: undefined OOB data must not reach sums.
            _accum(jnp.where(m, p, 0.0), jnp.where(m, t, 0.0))


@jax.jit
def dice_loss(pred, target, smooth=1e-06):
    """Pallas equivalent of DiceLoss.forward(pred, target)."""
    pred_f = pred.reshape(-1)
    target_f = target.reshape(-1)
    n = pred_f.shape[0]

    # Lane alignment. Common case (n % 128 == 0, n >= 2048): pure bitcast
    # reshape, zero extra HBM traffic. Tiny/unaligned inputs: small pad only.
    min_len = ROW_ALIGN * LANE
    padded_len = max(pl.cdiv(n, LANE) * LANE, min_len)
    if padded_len != n:
        pred_f = jnp.pad(pred_f, (0, padded_len - n))
        target_f = jnp.pad(target_f, (0, padded_len - n))

    rows = padded_len // LANE
    pred2 = pred_f.reshape(rows, LANE)
    target2 = target_f.reshape(rows, LANE)

    # Tile size: largest lane-dense tile within the per-step byte budget.
    elem_bytes = pred.dtype.itemsize + target.dtype.itemsize
    cap_rows = (TILE_BYTES_BUDGET // (LANE * elem_bytes)) // ROW_ALIGN * ROW_ALIGN
    tile_rows = min(cap_rows, (rows // ROW_ALIGN) * ROW_ALIGN)
    nblk = pl.cdiv(rows, tile_rows)

    # Split the stream across TensorCores (2 TCs on v7x share 3.2 TB/s HBM;
    # on 1-TC v5e/v6e the two splits simply run back-to-back — no extra cost).
    n_splits = 2 if nblk >= 2 else 1
    bps = pl.cdiv(nblk, n_splits)   # row-blocks per split

    all_tiles_full = (n == padded_len and rows == nblk * tile_rows
                      and nblk == n_splits * bps)

    if n_splits * bps == nblk:
        in_map = lambda c, i: (c * bps + i, 0)
    else:
        last_blk = nblk - 1
        # Clamp so the (possible) dead trailing tile of the last split re-reads
        # a valid block; its contribution is masked to zero in-kernel.
        in_map = lambda c, i: (jnp.minimum(c * bps + i, last_blk), 0)

    tile_spec = pl.BlockSpec((tile_rows, LANE), in_map)
    out_spec = pl.BlockSpec((1, 2, ACC_ROWS, LANE), lambda c, i: (c, 0, 0, 0))

    cost = pl.CostEstimate(flops=5 * n, transcendentals=n,
                           bytes_accessed=n * elem_bytes)

    partials = pl.pallas_call(
        functools.partial(_dice_kernel, n_valid=n, blocks_per_split=bps,
                          all_tiles_full=all_tiles_full),
        out_shape=jax.ShapeDtypeStruct((n_splits, 2, ACC_ROWS, LANE), jnp.float32),
        grid_spec=pltpu.PrefetchScalarGridSpec(
            num_scalar_prefetch=0,
            grid=(n_splits, bps),
            in_specs=[tile_spec, tile_spec],
            out_specs=out_spec,
        ),
        compiler_params=pltpu.CompilerParams(
            dimension_semantics=("parallel", "arbitrary")),
        cost_estimate=cost,
    )(pred2, target2)

    # Finalize in plain JAX: a reduction over n_splits*2*8*128 floats is trivial.
    inter = jnp.sum(partials[:, 0])
    denom = jnp.sum(partials[:, 1])
    dice = (2.0 * inter + smooth) / (denom + smooth)
    return 1.0 - dice


def dice_loss_ref(pred, target, smooth=1e-06):
    p = jax.nn.sigmoid(pred.astype(jnp.float32)).reshape(-1)
    t = target.astype(jnp.float32).reshape(-1)
    inter = jnp.sum(p * t)
    dice = (2.0 * inter + smooth) / (jnp.sum(p) + jnp.sum(t) + smooth)
    return 1.0 - dice


if __name__ == "__main__":
    key = jax.random.PRNGKey(0)
    k1, k2 = jax.random.split(key)
    # NCHW logits and binary mask target, as the PyTorch module expects.
    pred = jax.random.normal(k1, (2, 4, 16, 16), dtype=jnp.float32)
    # Binary mask pushed upstream to bf16 (memory-bound kernel: fewer HBM bytes).
    target = (jax.random.uniform(k2, (2, 4, 16, 16)) > 0.5).astype(jnp.bfloat16)

    out = dice_loss(pred, target)
    jax.block_until_ready(out)

    ref = dice_loss_ref(pred, target)
    assert jnp.allclose(out, ref, atol=1e-4, rtol=1e-4), (out, ref)
    print("KERNEL_OK")
</pallas_src>

<mosaic_0001>
module attributes {stable_mosaic.version = 11 : i64} {
  func.func @_dice_kernel(%arg0: i32, %arg1: i32, %arg2: memref<16x128xf32, #tpu.memory_space<vmem>>, %arg3: memref<16x128xbf16, #tpu.memory_space<vmem>>, %arg4: memref<1x2x8x128xf32, #tpu.memory_space<vmem>>) attributes {dimension_semantics = [#tpu.dimension_semantics<parallel>, #tpu.dimension_semantics<arbitrary>], iteration_bounds = array<i64: 1, 1>, scalar_prefetch = 0 : i64, scratch_operands = 0 : i64, tpu.core_type = #tpu.core_type<tc>, window_params = [{transform_indices = @transform_0, window_bounds = array<i64: 16, 128>}, {transform_indices = @transform_1, window_bounds = array<i64: 16, 128>}, {transform_indices = @transform_2, window_bounds = array<i64: 1, 2, 8, 128>}]} {
    %c0_i32 = arith.constant 0 : i32
    %0 = arith.cmpi eq, %arg1, %c0_i32 : i32
    %1 = arith.extui %0 : i1 to i32
    %c0_i32_0 = arith.constant 0 : i32
    %2 = arith.cmpi ne, %1, %c0_i32_0 : i32
    scf.if %2 {
      %cst_23 = arith.constant 0.000000e+00 : f32
      %31 = vector.broadcast %cst_23 : f32 to vector<1x2x8x128xf32>
      %c0_24 = arith.constant 0 : index
      %c0_25 = arith.constant 0 : index
      %c0_26 = arith.constant 0 : index
      %c0_27 = arith.constant 0 : index
      %32 = vector.load %arg4[%c0_24, %c0_25, %c0_26, %c0_27] : memref<1x2x8x128xf32, #tpu.memory_space<vmem>>, vector<1x2x8x128xf32>
      tpu.vector_store %arg4[%c0_24, %c0_25, %c0_26, %c0_27], %31 {strides = array<i32>} : memref<1x2x8x128xf32, #tpu.memory_space<vmem>>, vector<1x2x8x128xf32>,
    } else {
    }
    %c0 = arith.constant 0 : index
    %c0_1 = arith.constant 0 : index
    %3 = vector.load %arg2[%c0, %c0_1] : memref<16x128xf32, #tpu.memory_space<vmem>>, vector<16x128xf32>
    %cst = arith.constant 5.000000e-01 : f32
    %4 = vector.broadcast %cst : f32 to vector<16x128xf32>
    %5 = arith.mulf %4, %3 : vector<16x128xf32>
    %6 = math.tanh %5 : vector<16x128xf32>
    %cst_2 = arith.constant 5.000000e-01 : f32
    %7 = vector.broadcast %cst_2 : f32 to vector<16x128xf32>
    %8 = arith.mulf %7, %6 : vector<16x128xf32>
    %cst_3 = arith.constant 5.000000e-01 : f32
    %9 = vector.broadcast %cst_3 : f32 to vector<16x128xf32>
    %10 = arith.addf %8, %9 : vector<16x128xf32>
    %c0_4 = arith.constant 0 : index
    %c0_5 = arith.constant 0 : index
    %11 = vector.load %arg3[%c0_4, %c0_5] : memref<16x128xbf16, #tpu.memory_space<vmem>>, vector<16x128xbf16>
    %12 = arith.extf %11 : vector<16x128xbf16> to vector<16x128xf32>
    %13 = arith.mulf %10, %12 : vector<16x128xf32>
    %14 = vector.shape_cast %13 : vector<16x128xf32> to vector<2x8x128xf32>
    %cst_6 = arith.constant dense<0.000000e+00> : vector<8x128xf32>
    %15 = vector.multi_reduction <add>, %14, %cst_6 [0] : vector<2x8x128xf32> to vector<8x128xf32>
    %16 = arith.addf %10, %12 : vector<16x128xf32>
    %17 = vector.shape_cast %16 : vector<16x128xf32> to vector<2x8x128xf32>
    %cst_7 = arith.constant dense<0.000000e+00> : vector<8x128xf32>
    %18 = vector.multi_reduction <add>, %17, %cst_7 [0] : vector<2x8x128xf32> to vector<8x128xf32>
    %c0_8 = arith.constant 0 : index
    %c0_9 = arith.constant 0 : index
    %c0_10 = arith.constant 0 : index
    %c0_11 = arith.constant 0 : index
    %19 = vector.load %arg4[%c0_8, %c0_9, %c0_10, %c0_11] : memref<1x2x8x128xf32, #tpu.memory_space<vmem>>, vector<1x1x8x128xf32>
    %20 = vector.shape_cast %19 : vector<1x1x8x128xf32> to vector<8x128xf32>
    %21 = arith.addf %20, %15 : vector<8x128xf32>
    %c0_12 = arith.constant 0 : index
    %c0_13 = arith.constant 0 : index
    %c0_14 = arith.constant 0 : index
    %c0_15 = arith.constant 0 : index
    %22 = vector.load %arg4[%c0_12, %c0_13, %c0_14, %c0_15] : memref<1x2x8x128xf32, #tpu.memory_space<vmem>>, vector<1x1x8x128xf32>
    %23 = vector.shape_cast %22 : vector<1x1x8x128xf32> to vector<8x128xf32>
    %24 = vector.shape_cast %21 : vector<8x128xf32> to vector<1x1x8x128xf32>
    tpu.vector_store %arg4[%c0_12, %c0_13, %c0_14, %c0_15], %24 {strides = array<i32>} : memref<1x2x8x128xf32, #tpu.memory_space<vmem>>, vector<1x1x8x128xf32>,
    %c0_16 = arith.constant 0 : index
    %c1 = arith.constant 1 : index
    %c0_17 = arith.constant 0 : index
    %c0_18 = arith.constant 0 : index
    %25 = vector.load %arg4[%c0_16, %c1, %c0_17, %c0_18] : memref<1x2x8x128xf32, #tpu.memory_space<vmem>>, vector<1x1x8x128xf32>
    %26 = vector.shape_cast %25 : vector<1x1x8x128xf32> to vector<8x128xf32>
    %27 = arith.addf %26, %18 : vector<8x128xf32>
    %c0_19 = arith.constant 0 : index
    %c1_20 = arith.constant 1 : index
    %c0_21 = arith.constant 0 : index
    %c0_22 = arith.constant 0 : index
    %28 = vector.load %arg4[%c0_19, %c1_20, %c0_21, %c0_22] : memref<1x2x8x128xf32, #tpu.memory_space<vmem>>, vector<1x1x8x128xf32>
    %29 = vector.shape_cast %28 : vector<1x1x8x128xf32> to vector<8x128xf32>
    %30 = vector.shape_cast %27 : vector<8x128xf32> to vector<1x1x8x128xf32>
    tpu.vector_store %arg4[%c0_19, %c1_20, %c0_21, %c0_22], %30 {strides = array<i32>} : memref<1x2x8x128xf32, #tpu.memory_space<vmem>>, vector<1x1x8x128xf32>,
    return
  }
  func.func @transform_0(%arg0: i32, %arg1: i32) -> (i32, i32) {
    %c1_i32 = arith.constant 1 : i32
    %0 = arith.muli %arg0, %c1_i32 : i32
    %1 = arith.addi %0, %arg1 : i32
    %c0_i32 = arith.constant 0 : i32
    %c0_i32_0 = arith.constant 0 : i32
    return %1, %c0_i32 : i32, i32
  }
  func.func @transform_1(%arg0: i32, %arg1: i32) -> (i32, i32) {
    %c1_i32 = arith.constant 1 : i32
    %0 = arith.muli %arg0, %c1_i32 : i32
    %1 = arith.addi %0, %arg1 : i32
    %c0_i32 = arith.constant 0 : i32
    %c0_i32_0 = arith.constant 0 : i32
    return %1, %c0_i32 : i32, i32
  }
  func.func @transform_2(%arg0: i32, %arg1: i32) -> (i32, i32, i32, i32) {
    %c0_i32 = arith.constant 0 : i32
    %c0_i32_0 = arith.constant 0 : i32
    %c0_i32_1 = arith.constant 0 : i32
    %c0_i32_2 = arith.constant 0 : i32
    return %arg0, %c0_i32, %c0_i32_0, %c0_i32_1 : i32, i32, i32, i32
  }
}

</mosaic_0001>

<llo_original>
// kernel: dice_loss.1
$region0: #{dice_loss.1}
  #allocation0 [shape = 'u32[]', space=smem, size = 0x4, offset = 0x4, fixed_abs, tag = 'smem constant byte address 0x4 - core index']
  #allocation1 [shape = 'u32[144,128]{1,0:T(1,128)}', space=vmem, size = 0x12000, scoped, tag = 'internal scratch']
  %s0 = inlined_call_operand.vmem [shape: f32[16,128], index: 0, kind: input, shape index: {}]
  %s1 = inlined_call_operand.vmem [shape: bf16[16,128], index: 1, kind: input, shape index: {}]
  %s2 = inlined_call_operand.vmem [shape: f32[1,2,8,128], index: 2, kind: output, shape index: {}]
  %s3 = sld [smem:[#allocation0]]
  $region22: #{dice_loss.1} parent=0
    _
  %s5 = ssub.s32 1, %s3
  %s6 = scalar_select 0, %s5, %s3
  // Predicated region
  $region2: #{dice_loss.1} parent=0 // pred_check
    _
  $region3: #{dice_loss.1} parent=0 // pred_check_branch
    %8 = sbr.rel (0) target = $region5
  $region4: #{dice_loss.1} parent=0 // pred_region
    %s9 = sadd.s32 0, 0
    %s10 = smul.u32 2, %s9
    %p11 = scmp.lt.s32.totalorder %s10, 1
    %s12 = scalar_select %p11, %s10, 1
    %s13 = smul.addr %s12, 8
    %s14 = scalar_lea.vmem %s0, %s13
    %s15 = sadd.s32 0, 0
    %s16 = smul.u32 2, %s15
  $region5: #{dice_loss.1} parent=0 // pred_fallthru
    _
  // Predicated region
  $region6: #{dice_loss.1} parent=0 // pred_check
    _
  $region7: #{dice_loss.1} parent=0 // pred_check_branch
    %18 = sbr.rel (0) target = $region9
  $region8: #{dice_loss.1} parent=0 // pred_region
    %s19 = sadd.s32 0, 0
    %s20 = smul.u32 2, %s19
    %p21 = scmp.lt.s32.totalorder %s20, 1
    %s22 = scalar_select %p21, %s20, 1
    %s23 = smul.addr %s22, 4
    %s24 = scalar_lea.vmem %s1, %s23
    %s25 = sadd.s32 0, 0
    %s26 = smul.u32 2, %s25
  $region9: #{dice_loss.1} parent=0 // pred_fallthru
    _
  %s27 = sadd.s32 0, 0
  %s28 = smul.u32 2, %s27
  %p29 = scmp.lt.s32.totalorder %s28, 1
  %s30 = scalar_select %p29, %s28, 1
  %s31 = smul.addr %s30, 8
  %s32 = scalar_lea.vmem %s0, %s31
  %s33 = sadd.s32 0, 0
  %s34 = smul.u32 2, %s33
  %p35 = scmp.lt.s32.totalorder %s34, 1
  %s36 = scalar_select %p35, %s34, 1
  %s37 = smul.addr %s36, 4
  %s38 = scalar_lea.vmem %s1, %s37
  %s39 = sadd.s32 0, 0
  %s40 = smul.u32 2, %s39
  %p41 = scmp.lt.s32.totalorder %s40, 1
  %s42 = scalar_select %p41, %s40, 1
  %s43 = smul.addr %s42, 8
  %s44 = scalar_lea.vmem %s0, %s43
  %s45 = sadd.s32 0, 0
  %s46 = smul.u32 2, %s45
  %s47 = sadd.s32 0, 0
  %s48 = smul.u32 2, %s47
  %p49 = scmp.lt.s32.totalorder %s48, 1
  %s50 = scalar_select %p49, %s48, 1
  %s51 = smul.addr %s50, 4
  %s52 = scalar_lea.vmem %s1, %s51
  %s53 = sadd.s32 0, 0
  %s54 = smul.u32 2, %s53
  %p55 = scmp.eq.s32.totalorder 0, 0
  // Predicated region
  $region10: #{dice_loss.1} parent=0 // pred_check
    %p56 = pneg %p55
  $region11: #{dice_loss.1} parent=0 // pred_check_branch
    %58 = sbr.rel (%p56) target = $region13
  $region12: #{dice_loss.1} parent=0 // pred_region
    %59 = vst [vmem:[%s2] sm:$0xff] 0.0
    %60 = vst [vmem:[%s2 + $0x8] sm:$0xff] 0.0
  $region13: #{dice_loss.1} parent=0 // pred_fallthru
    _
  %v61 = vld [vmem:[%s44] sm:$0xff]
  %v62 = vld [vmem:[%s44 + $0x8] sm:$0xff]
  %v63 = vmul.f32 %v61, 0.5
  %v64 = vmul.f32 %v62, 0.5
  %v65 = vtanh.pop %v63
  %v66 = vtanh.pop %v64
  %v67 = vmul.f32 %v65, 0.5
  %v68 = vmul.f32 %v66, 0.5
  %v69 = vadd.f32 %v67, 0.5
  %v70 = vadd.f32 %v68, 0.5
  %v71 = vld [vmem:[%s52] sm:$0xf]
  %v72 = vld [vmem:[%s52 + $0x4] sm:$0xf]
  %v73 = vunpack.c.l.bf16 %v71
  %v74 = vunpack.c.l.bf16 %v72
  %v75 = vmul.f32 %v69, %v73
  %v76 = vmul.f32 %v70, %v74
  %v77 = vadd.f32 %v75, %v76
  %v78 = vadd.f32 %v69, %v73
  %v79 = vadd.f32 %v70, %v74
  %v80 = vadd.f32 %v78, %v79
  %v81 = vld [vmem:[%s2] sm:$0xff]
  %v82 = vadd.f32 %v81, %v77
  %83 = vst [vmem:[%s2] sm:$0xff] %v82
  %s84 = scalar_lea.vmem %s2, 8
  %v85 = vld [vmem:[%s84] sm:$0xff]
  %v86 = vadd.f32 %v85, %v80
  %87 = vst [vmem:[%s84] sm:$0xff] %v86
  // Predicated region
  $region14: #{dice_loss.1} parent=0 // pred_check
    _
  $region15: #{dice_loss.1} parent=0 // pred_check_branch
    %89 = sbr.rel (0) target = $region17
  $region16: #{dice_loss.1} parent=0 // pred_region
    _
  $region17: #{dice_loss.1} parent=0 // pred_fallthru
    _
  // Predicated region
  $region18: #{dice_loss.1} parent=0 // pred_check
    _
  $region19: #{dice_loss.1} parent=0 // pred_check_branch
    %91 = sbr.rel (0) target = $region21
  $region20: #{dice_loss.1} parent=0 // pred_region
    _
  $region21: #{dice_loss.1} parent=0 // pred_fallthru
    _

</llo_original>
